<compile_context>
chip_gen: v5e
topology: v5e:2x2
jax: 0.10.0
libtpu: 0.0.40
codegen_flags: <defaults>
</compile_context>

<pallas_src>
import math

import jax
import jax.numpy as jnp
from jax.experimental import pallas as pl
from jax.experimental.pallas import tpu as pltpu


def _round_up(v, m):
    return ((v + m - 1) // m) * m


def _gcn_score_kernel(a_ref, xw_ref, b_ref, score_ref):
    """One (tm, tk) tile of score = A_norm @ (X W) + b.

    Grid = (row tiles, K tiles); K is last and "arbitrary".  The output block's
    index_map is constant in k, so it is resident across the reduction and is
    used directly as the f32 accumulator (no scratch needed).
    """
    k = pl.program_id(1)
    tk = a_ref.shape[1]

    @pl.when(k == 0)
    def _():
        score_ref[...] = jnp.zeros_like(score_ref)

    # XW is fully resident (constant index_map); slice the current K chunk.
    off = pl.multiple_of(k * tk, tk)
    xw_blk = xw_ref[pl.ds(off, tk), :]                       # (tk, 128) bf16
    score_ref[...] += jnp.dot(a_ref[...], xw_blk,
                              preferred_element_type=jnp.float32)

    @pl.when(k == pl.num_programs(1) - 1)
    def _():
        score_ref[...] += b_ref[0]                           # f32 bias, once


def gcn_norm_adj_padded(edge_index, num_nodes, padded_nodes):
    """Fused build of the zero-padded, normalized, bf16 dense adjacency.

    Dense equivalent of PyG gcn_norm with add_self_loops=True:
        A_hat = A + I ;  A_norm = D^{-1/2} A_hat D^{-1/2}
    Messages flow edge_index[0] (source) -> edge_index[1] (target), so
    A[target, source] = 1.  Built directly at padded size with a single fused
    scale+cast pass (no extra f32 copy / .at[:N, :N].set round-trip in HBM).
    Padded rows/cols have degree 0 -> normalized to exactly zero.
    """
    src, dst = edge_index[0], edge_index[1]
    a_hat = (jnp.zeros((padded_nodes, padded_nodes), jnp.float32)
             .at[dst, src].add(1.0))
    diag = jnp.arange(num_nodes, dtype=jnp.int32)
    a_hat = a_hat.at[diag, diag].add(1.0)        # self loops on real nodes only
    deg = a_hat.sum(axis=1)
    d_inv_sqrt = jnp.where(deg > 0.0, jax.lax.rsqrt(deg), 0.0)
    # TODO(synk): for directed graphs PyG's gcn_norm uses the source/target
    # degree convention; this row-sum normalization matches it only for
    # symmetric edge_index.
    # TODO(synk): for large sparse graphs replace this dense O(N^2) build +
    # dense kernel with a CSR neighbor-gather kernel (PrefetchScalarGridSpec +
    # manual make_async_copy); HBM traffic drops from O(N^2) to O(E).
    return (d_inv_sqrt[:, None] * a_hat * d_inv_sqrt[None, :]).astype(
        jnp.bfloat16)


def gcn_score(edge_index, x, w, b, *, tm=512, tk=1024):
    """GCNConv(in_channels, 1) node scores: score = A_norm @ (X W) + b, (N,)."""
    N, C = x.shape
    # K-tiled 2-D grid decouples tile size from graph size: double-buffered A
    # tiles cost 2*tm*tk*2 B (= 2 MiB at 512x1024) regardless of N, which fits
    # the default scoped VMEM on every generation (16 MiB v5e, 32 MiB v6e/v7x;
    # v7x has only 64 MiB physical so we size for it rather than raising
    # vmem_limit_bytes).  Each step's A DMA moves ~1 MiB, amortizing the
    # ~0.35 us per-grid-step overhead on all generations.
    Np0 = _round_up(max(N, 256), 256)
    tm = min(tm, Np0)
    tk = min(tk, Np0)
    Np = _round_up(Np0, max(tm, tk))    # tm, tk are powers of two -> divides

    # Fused normalized/padded/bf16 adjacency build (dominant HBM producer).
    a_norm = gcn_norm_adj_padded(edge_index, N, Np)          # (Np, Np) bf16

    # X @ W projection kept in f32 in the wrapper (full accuracy), then
    # lane-broadcast to 128 so the MXU RHS and the score store are lane-dense.
    # The staging copy itself is bf16 to match A: a f32 RHS would promote the
    # dot to an f32 MXU pass and flip v5e/v7x from HBM-bound to MXU-bound,
    # while A's own bf16 rounding already bounds the accuracy; accumulation
    # and bias stay f32.
    xw = x.astype(jnp.float32) @ w.reshape(C, 1).astype(jnp.float32)   # (N, 1)
    xw_pad = jnp.zeros((Np, 1), jnp.float32).at[:N, :].set(xw)
    xw128 = jnp.broadcast_to(xw_pad, (Np, 128)).astype(jnp.bfloat16)
    b1 = b.reshape(1).astype(jnp.float32)

    grid = (Np // tm, Np // tk)
    score_p = pl.pallas_call(
        _gcn_score_kernel,
        out_shape=jax.ShapeDtypeStruct((Np, 128), jnp.float32),
        grid=grid,
        in_specs=[
            # Heavy stream: (tm, tk) bf16 A tile.  (pipeline_mode=pl.Buffered(3)
            # is an optional knob to hide DMA issue latency at these tile sizes.)
            pl.BlockSpec((tm, tk), lambda i, k: (i, k)),
            # XW broadcast: constant index_map -> DMA'd once, VMEM-resident.
            pl.BlockSpec((Np, 128), lambda i, k: (0, 0)),
            pl.BlockSpec(memory_space=pltpu.MemorySpace.SMEM),   # bias scalar
        ],
        # Constant in k -> resident accumulator, written back when i advances.
        out_specs=pl.BlockSpec((tm, 128), lambda i, k: (i, 0)),
        compiler_params=pltpu.CompilerParams(
            dimension_semantics=("parallel", "arbitrary")),
        cost_estimate=pl.CostEstimate(
            flops=2 * Np * Np * 128,
            transcendentals=0,
            bytes_accessed=Np * Np * 2 + Np * 128 * 2 + Np * 128 * 4),
    )(a_norm, xw128, b1)
    # All 128 lanes are identical; padded rows (score == bias) are sliced away
    # here so they can never be selected by the top-k that follows.
    return score_p[:N, 0]


def sagpool_forward(x, edge_index, w, b, ratio=0.8, edge_attr=None, batch=None):
    N = x.shape[0]
    if batch is None:
        batch = jnp.zeros((N,), dtype=edge_index.dtype)

    score = gcn_score(edge_index, x, w, b)                   # Pallas kernel

    # top-k over a single graph (batch all zeros): k = ceil(ratio * N).
    # TODO(synk): per-graph pooling for multi-graph batches (torch_geometric
    # topk(score, ratio, batch)) needs segment-wise selection; plain JAX glue,
    # global top-k only, matching the single-graph case.
    k = int(math.ceil(ratio * N))
    _, perm = jax.lax.top_k(score, k)

    # Gate only the surviving rows — exactly the PyTorch semantics
    # x[perm] * tanh(score[perm]).view(-1, 1); tiny fused XLA, keeps the
    # (N, C) feature stream out of the HBM-bound kernel.
    x_out = x[perm] * jnp.tanh(score[perm])[:, None]
    batch_out = batch[perm]

    # filter_adj: keep edges whose endpoints both survive, relabel node ids.
    # TODO(synk): boolean-mask edge filtering is dynamic-shape; plain JAX glue.
    keep = jnp.zeros((N,), dtype=bool).at[perm].set(True)
    new_id = jnp.full((N,), -1, dtype=jnp.int32).at[perm].set(
        jnp.arange(k, dtype=jnp.int32))
    row, col = edge_index[0], edge_index[1]
    edge_mask = keep[row] & keep[col]
    edge_index_out = jnp.stack([new_id[row][edge_mask], new_id[col][edge_mask]])
    edge_attr_out = None if edge_attr is None else edge_attr[edge_mask]

    return x_out, edge_index_out, edge_attr_out, batch_out, perm


if __name__ == "__main__":
    key = jax.random.PRNGKey(0)
    N, C = 16, 8          # num_nodes, in_channels
    ratio = 0.8
    k_x, k_w = jax.random.split(key)

    x = jax.random.normal(k_x, (N, C), dtype=jnp.float32)

    # Undirected ring graph, both directions included: (2, 2N) edge_index.
    src = jnp.arange(N, dtype=jnp.int32)
    dst = (src + 1) % N
    edge_index = jnp.concatenate(
        [jnp.stack([src, dst]), jnp.stack([dst, src])], axis=1)

    # GCNConv(in_channels=C, out_channels=1) parameters, deterministic init.
    w = (jax.random.normal(k_w, (C, 1), dtype=jnp.float32)
         * (1.0 / math.sqrt(C))).astype(jnp.float32)
    b = jnp.zeros((1,), dtype=jnp.float32)

    # Sanity check of the Pallas score kernel against a plain-JAX f32
    # reference (loose tolerance: A_norm / XW are staged as bf16, accum f32).
    a = jnp.zeros((N, N), jnp.float32).at[edge_index[1], edge_index[0]].add(1.0)
    a_hat = a + jnp.eye(N, dtype=jnp.float32)
    deg = a_hat.sum(axis=1)
    dis = jnp.where(deg > 0.0, jax.lax.rsqrt(deg), 0.0)
    a_norm_ref = dis[:, None] * a_hat * dis[None, :]
    score_ref = (a_norm_ref @ (x @ w) + b).reshape(-1)

    score_krn = gcn_score(edge_index, x, w, b)
    assert jnp.allclose(score_krn, score_ref, rtol=5e-2, atol=5e-2)

    x_out, edge_index_out, edge_attr_out, batch_out, perm = sagpool_forward(
        x, edge_index, w, b, ratio=ratio)
    jax.block_until_ready((x_out, edge_index_out, batch_out, perm))

    # Gated output matches the reference gating on the selected rows.
    x_out_ref = x[perm] * jnp.tanh(score_ref[perm])[:, None]
    assert jnp.allclose(x_out, x_out_ref, rtol=5e-2, atol=5e-2)

    print("KERNEL_OK")
</pallas_src>

<mosaic_0001>
module attributes {stable_mosaic.version = 11 : i64} {
  func.func @_gcn_score_kernel(%arg0: i32, %arg1: i32, %arg2: memref<256x256xbf16, #tpu.memory_space<vmem>>, %arg3: memref<256x128xbf16, #tpu.memory_space<vmem>>, %arg4: memref<1xf32, #tpu.memory_space<smem>>, %arg5: memref<256x128xf32, #tpu.memory_space<vmem>>) attributes {dimension_semantics = [#tpu.dimension_semantics<parallel>, #tpu.dimension_semantics<arbitrary>], iteration_bounds = array<i64: 1, 1>, scalar_prefetch = 0 : i64, scratch_operands = 0 : i64, tpu.core_type = #tpu.core_type<tc>, window_params = [{transform_indices = @transform_0, window_bounds = array<i64: 256, 256>}, {pipeline_mode = #tpu.pipeline_mode<synchronous>, transform_indices = @transform_1, window_bounds = array<i64: 256, 128>}, {transform_indices = @transform_2, window_bounds = array<i64: 1>}, {transform_indices = @transform_3, window_bounds = array<i64: 256, 128>}]} {
    %c0_i32 = arith.constant 0 : i32
    %0 = arith.cmpi eq, %arg1, %c0_i32 : i32
    %1 = arith.extui %0 : i1 to i32
    %c0_i32_0 = arith.constant 0 : i32
    %2 = arith.cmpi ne, %1, %c0_i32_0 : i32
    scf.if %2 {
      %cst_9 = arith.constant 0.000000e+00 : f32
      %15 = vector.broadcast %cst_9 : f32 to vector<256x128xf32>
      %c0_10 = arith.constant 0 : index
      %c0_11 = arith.constant 0 : index
      %16 = vector.load %arg5[%c0_10, %c0_11] : memref<256x128xf32, #tpu.memory_space<vmem>>, vector<256x128xf32>
      tpu.vector_store %arg5[%c0_10, %c0_11], %15 {strides = array<i32>} : memref<256x128xf32, #tpu.memory_space<vmem>>, vector<256x128xf32>,
    } else {
    }
    %c256_i32 = arith.constant 256 : i32
    %3 = arith.muli %arg1, %c256_i32 : i32
    %4 = tpu.assume_multiple %3, 256 : i32
    %5 = arith.index_cast %4 : i32 to index
    %c0 = arith.constant 0 : index
    %6 = vector.load %arg3[%5, %c0] : memref<256x128xbf16, #tpu.memory_space<vmem>>, vector<256x128xbf16>
    %c0_1 = arith.constant 0 : index
    %c0_2 = arith.constant 0 : index
    %7 = vector.load %arg5[%c0_1, %c0_2] : memref<256x128xf32, #tpu.memory_space<vmem>>, vector<256x128xf32>
    %c0_3 = arith.constant 0 : index
    %c0_4 = arith.constant 0 : index
    %8 = vector.load %arg2[%c0_3, %c0_4] : memref<256x256xbf16, #tpu.memory_space<vmem>>, vector<256x256xbf16>
    %cst = arith.constant dense<0.000000e+00> : vector<256x128xf32>
    %9 = tpu.matmul %8, %6, %cst {dimension_numbers = #tpu.dot_dimension_numbers<[1], [0], [0], [1], [0, 0, 1, 1], [], []>} : vector<256x256xbf16>, vector<256x128xbf16>, vector<256x128xf32> -> vector<256x128xf32>
    %10 = arith.addf %7, %9 : vector<256x128xf32>
    %c0_5 = arith.constant 0 : index
    %c0_6 = arith.constant 0 : index
    %11 = vector.load %arg5[%c0_5, %c0_6] : memref<256x128xf32, #tpu.memory_space<vmem>>, vector<256x128xf32>
    tpu.vector_store %arg5[%c0_5, %c0_6], %10 {strides = array<i32>} : memref<256x128xf32, #tpu.memory_space<vmem>>, vector<256x128xf32>,
    %c0_i32_7 = arith.constant 0 : i32
    %12 = arith.cmpi eq, %arg1, %c0_i32_7 : i32
    %13 = arith.extui %12 : i1 to i32
    %c0_i32_8 = arith.constant 0 : i32
    %14 = arith.cmpi ne, %13, %c0_i32_8 : i32
    scf.if %14 {
      %c0_9 = arith.constant 0 : index
      %c0_10 = arith.constant 0 : index
      %15 = vector.load %arg5[%c0_9, %c0_10] : memref<256x128xf32, #tpu.memory_space<vmem>>, vector<256x128xf32>
      %c0_11 = arith.constant 0 : index
      %16 = memref.load %arg4[%c0_11] : memref<1xf32, #tpu.memory_space<smem>>
      %17 = vector.broadcast %16 : f32 to vector<256x128xf32>
      %18 = arith.addf %15, %17 : vector<256x128xf32>
      %c0_12 = arith.constant 0 : index
      %c0_13 = arith.constant 0 : index
      %19 = vector.load %arg5[%c0_12, %c0_13] : memref<256x128xf32, #tpu.memory_space<vmem>>, vector<256x128xf32>
      tpu.vector_store %arg5[%c0_12, %c0_13], %18 {strides = array<i32>} : memref<256x128xf32, #tpu.memory_space<vmem>>, vector<256x128xf32>,
    } else {
    }
    return
  }
  func.func @transform_0(%arg0: i32, %arg1: i32) -> (i32, i32) {
    %c0_i32 = arith.constant 0 : i32
    return %arg0, %arg1 : i32, i32
  }
  func.func @transform_1(%arg0: i32, %arg1: i32) -> (i32, i32) {
    %c0_i32 = arith.constant 0 : i32
    %c0_i32_0 = arith.constant 0 : i32
    %c0_i32_1 = arith.constant 0 : i32
    return %c0_i32, %c0_i32_0 : i32, i32
  }
  func.func @transform_2(%arg0: i32, %arg1: i32) -> i32 {
    %c0_i32 = arith.constant 0 : i32
    %c0_i32_0 = arith.constant 0 : i32
    return %c0_i32 : i32
  }
  func.func @transform_3(%arg0: i32, %arg1: i32) -> (i32, i32) {
    %c0_i32 = arith.constant 0 : i32
    %c0_i32_0 = arith.constant 0 : i32
    return %arg0, %c0_i32 : i32, i32
  }
}

</mosaic_0001>

<llo_original>
// kernel: tpu_custom_call.1
$region0: #{tpu_custom_call.1}
  #allocation0 [shape = 'u32[]', space=smem, size = 0x4, offset = 0x4, fixed_abs, tag = 'smem constant byte address 0x4 - core index']
  #allocation1 [shape = 'u32[72,128]{1,0:T(1,128)}', space=vmem, size = 0x9000, scoped, tag = 'internal scratch']
  #allocation2 [shape = 'f32[1]{0:T(128)S(6)}', space=smem, size = 0x200, scoped, tag = 'scoped memory for tpu_custom_call.1']
  %s0 = inlined_call_operand.hbm [shape: bf16[256,256], index: 0, kind: input, shape index: {}]
  %s1 = inlined_call_operand.hbm [shape: bf16[256,128], index: 1, kind: input, shape index: {}]
  %s2 = inlined_call_operand.<no memory space> [shape: f32[1], index: 2, kind: input, shape index: {}]
  %s3 = inlined_call_operand.hbm [shape: f32[256,128], index: 3, kind: output, shape index: {}]
  %s4 = sld [smem:[#allocation0]]
  $region38: #{tpu_custom_call.1} parent=0
    _
  %s6 = ssub.s32 1, %s4
  %s7 = scalar_select 0, %s6, %s4
  %8 = sst [smem:[#allocation2]] %s2
  $region1: #{tpu_custom_call.1} parent=0
    #allocation3 [shape = 'u8[131072]{0}', space=vmem, size = 0x20000, scoped, tag = 'input window, operand 0, single buffered']
    #allocation4 [shape = 's32[1]{0}', space=sflag, size = 0x4, scoped, tag = 'scoped memory for tpu_custom_call.1']
    #allocation5 [shape = 's32[1]{0}', space=sflag, size = 0x4, scoped, tag = 'scoped memory for tpu_custom_call.1']
    #allocation6 [shape = 'u8[65536]{0}', space=vmem, size = 0x10000, scoped, tag = 'input window, operand 1, single buffered']
    #allocation7 [shape = 's32[1]{0}', space=sflag, size = 0x4, scoped, tag = 'scoped memory for tpu_custom_call.1']
    #allocation8 [shape = 'u8[131072]{0}', space=vmem, size = 0x20000, scoped, tag = 'output window, operand 0, single buffered']
    %9 = vsyncpa [#allocation4], 0
    %10 = vsyncpa [#allocation7], 0
    %11 = vsyncpa [#allocation5], 0
    // Predicated region
    $region2: #{tpu_custom_call.1} parent=1 // pred_check
      _
    $region3: #{tpu_custom_call.1} parent=1 // pred_check_branch
      %13 = sbr.rel (0) target = $region5
    $region4: #{tpu_custom_call.1} parent=1 // pred_region
      %15 = vsyncadd [#allocation4], 0
      %s16 = sshll.u32 %s0, 4
      %s17 = int_to_ptr.hbm [resolvable:$true] %s16
      %s18 = sshll.u32 [#allocation3], 4
      %s19 = int_to_ptr.vmem [resolvable:$true] %s18
      %24 = dma.hbm_to_vmem [thread:$0]  %s17, 4096, %s19, [#allocation4], 128, 128, 8
    $region5: #{tpu_custom_call.1} parent=1 // pred_fallthru
      _
    // Predicated region
    $region6: #{tpu_custom_call.1} parent=1 // pred_check
      _
    $region7: #{tpu_custom_call.1} parent=1 // pred_check_branch
      %26 = sbr.rel (0) target = $region9
    $region8: #{tpu_custom_call.1} parent=1 // pred_region
      %28 = vsyncadd [#allocation7], 0
      %s29 = sshll.u32 %s1, 4
      %s30 = int_to_ptr.hbm [resolvable:$true] %s29
      %s31 = sshll.u32 [#allocation6], 4
      %s32 = int_to_ptr.vmem [resolvable:$true] %s31
      %37 = dma.hbm_to_vmem [thread:$0]  %s30, 2048, %s32, [#allocation7], 64, 64, 4
    $region9: #{tpu_custom_call.1} parent=1 // pred_fallthru
      _
    // Predicated region
    $region10: #{tpu_custom_call.1} parent=1 // pred_check
      _
    $region11: #{tpu_custom_call.1} parent=1 // pred_check_branch
      %39 = sbr.rel (0) target = $region13
    $region12: #{tpu_custom_call.1} parent=1 // pred_region
      _
    $region13: #{tpu_custom_call.1} parent=1 // pred_fallthru
      _
    // Predicated region
    $region14: #{tpu_custom_call.1} parent=1 // pred_check
      _
    $region15: #{tpu_custom_call.1} parent=1 // pred_check_branch
      %41 = sbr.rel (0) target = $region17
    $region16: #{tpu_custom_call.1} parent=1 // pred_region
      %43 = dma.done [#allocation4], 4096
    $region17: #{tpu_custom_call.1} parent=1 // pred_fallthru
      _
    // Predicated region
    $region18: #{tpu_custom_call.1} parent=1 // pred_check
      _
    $region19: #{tpu_custom_call.1} parent=1 // pred_check_branch
      %45 = sbr.rel (0) target = $region21
    $region20: #{tpu_custom_call.1} parent=1 // pred_region
      %47 = dma.done [#allocation7], 2048
    $region21: #{tpu_custom_call.1} parent=1 // pred_fallthru
      _
    %p48 = scmp.eq.s32.totalorder 0, 0
    // Predicated region
    $region22: #{tpu_custom_call.1} parent=1 // pred_check
      %p49 = pneg %p48
    $region23: #{tpu_custom_call.1} parent=1 // pred_check_branch
      %51 = sbr.rel (%p49) target = $region25
    $region24: #{tpu_custom_call.1} parent=1 // pred_region
      %52 = vst [vmem:[#allocation8] sm:$0xff] 0.0
      %53 = vst [vmem:[#allocation8 + $0x8] sm:$0xff] 0.0
      %54 = vst [vmem:[#allocation8 + $0x10] sm:$0xff] 0.0
      %55 = vst [vmem:[#allocation8 + $0x18] sm:$0xff] 0.0
      %56 = vst [vmem:[#allocation8 + $0x20] sm:$0xff] 0.0
      %57 = vst [vmem:[#allocation8 + $0x28] sm:$0xff] 0.0
      %58 = vst [vmem:[#allocation8 + $0x30] sm:$0xff] 0.0
      %59 = vst [vmem:[#allocation8 + $0x38] sm:$0xff] 0.0
      %60 = vst [vmem:[#allocation8 + $0x40] sm:$0xff] 0.0
      %61 = vst [vmem:[#allocation8 + $0x48] sm:$0xff] 0.0
      %62 = vst [vmem:[#allocation8 + $0x50] sm:$0xff] 0.0
      %63 = vst [vmem:[#allocation8 + $0x58] sm:$0xff] 0.0
      %64 = vst [vmem:[#allocation8 + $0x60] sm:$0xff] 0.0
      %65 = vst [vmem:[#allocation8 + $0x68] sm:$0xff] 0.0
      %66 = vst [vmem:[#allocation8 + $0x70] sm:$0xff] 0.0
      %67 = vst [vmem:[#allocation8 + $0x78] sm:$0xff] 0.0
      %68 = vst [vmem:[#allocation8 + $0x80] sm:$0xff] 0.0
      %69 = vst [vmem:[#allocation8 + $0x88] sm:$0xff] 0.0
      %70 = vst [vmem:[#allocation8 + $0x90] sm:$0xff] 0.0
      %71 = vst [vmem:[#allocation8 + $0x98] sm:$0xff] 0.0
      %72 = vst [vmem:[#allocation8 + $0xa0] sm:$0xff] 0.0
      %73 = vst [vmem:[#allocation8 + $0xa8] sm:$0xff] 0.0
      %74 = vst [vmem:[#allocation8 + $0xb0] sm:$0xff] 0.0
      %75 = vst [vmem:[#allocation8 + $0xb8] sm:$0xff] 0.0
      %76 = vst [vmem:[#allocation8 + $0xc0] sm:$0xff] 0.0
      %77 = vst [vmem:[#allocation8 + $0xc8] sm:$0xff] 0.0
      %78 = vst [vmem:[#allocation8 + $0xd0] sm:$0xff] 0.0
      %79 = vst [vmem:[#allocation8 + $0xd8] sm:$0xff] 0.0
      %80 = vst [vmem:[#allocation8 + $0xe0] sm:$0xff] 0.0
      %81 = vst [vmem:[#allocation8 + $0xe8] sm:$0xff] 0.0
      %82 = vst [vmem:[#allocation8 + $0xf0] sm:$0xff] 0.0
      %83 = vst [vmem:[#allocation8 + $0xf8] sm:$0xff] 0.0
    $region25: #{tpu_custom_call.1} parent=1 // pred_fallthru
      _
    %s84 = smul.u32 0, 256
    %s85 = sshra.s32 %s84, 3
    %s86 = sand.u32 %s84, 7
    %s87 = smul.addr %s85, 4
    %s88 = scalar_lea.vmem [#allocation6], %s87
    %v89 = vld [vmem:[%s88] sm:$0xf]
    %v90 = vld [vmem:[%s88 + $0x4] sm:$0xf]
    %v91 = vld [vmem:[%s88 + $0x8] sm:$0xf]
    %v92 = vld [vmem:[%s88 + $0xc] sm:$0xf]
    %v93 = vld [vmem:[%s88 + $0x10] sm:$0xf]
    %v94 = vld [vmem:[%s88 + $0x14] sm:$0xf]
    %v95 = vld [vmem:[%s88 + $0x18] sm:$0xf]
    %v96 = vld [vmem:[%s88 + $0x1c] sm:$0xf]
    %v97 = vld [vmem:[%s88 + $0x20] sm:$0xf]
    %v98 = vld [vmem:[%s88 + $0x24] sm:$0xf]
    %v99 = vld [vmem:[%s88 + $0x28] sm:$0xf]
    %v100 = vld [vmem:[%s88 + $0x2c] sm:$0xf]
    %v101 = vld [vmem:[%s88 + $0x30] sm:$0xf]
    %v102 = vld [vmem:[%s88 + $0x34] sm:$0xf]
    %v103 = vld [vmem:[%s88 + $0x38] sm:$0xf]
    %v104 = vld [vmem:[%s88 + $0x3c] sm:$0xf]
    %v105 = vld [vmem:[%s88 + $0x40] sm:$0xf]
    %v106 = vld [vmem:[%s88 + $0x44] sm:$0xf]
    %v107 = vld [vmem:[%s88 + $0x48] sm:$0xf]
    %v108 = vld [vmem:[%s88 + $0x4c] sm:$0xf]
    %v109 = vld [vmem:[%s88 + $0x50] sm:$0xf]
    %v110 = vld [vmem:[%s88 + $0x54] sm:$0xf]
    %v111 = vld [vmem:[%s88 + $0x58] sm:$0xf]
    %v112 = vld [vmem:[%s88 + $0x5c] sm:$0xf]
    %v113 = vld [vmem:[%s88 + $0x60] sm:$0xf]
    %v114 = vld [vmem:[%s88 + $0x64] sm:$0xf]
    %v115 = vld [vmem:[%s88 + $0x68] sm:$0xf]
    %v116 = vld [vmem:[%s88 + $0x6c] sm:$0xf]
    %v117 = vld [vmem:[%s88 + $0x70] sm:$0xf]
    %v118 = vld [vmem:[%s88 + $0x74] sm:$0xf]
    %v119 = vld [vmem:[%s88 + $0x78] sm:$0xf]
    %v120 = vld [vmem:[%s88 + $0x7c] sm:$0xf]
    %v121 = vld [vmem:[#allocation8] sm:$0xff]
    %v122 = vld [vmem:[#allocation8 + $0x8] sm:$0xff]
    %v123 = vld [vmem:[#allocation8 + $0x10] sm:$0xff]
    %v124 = vld [vmem:[#allocation8 + $0x18] sm:$0xff]
    %v125 = vld [vmem:[#allocation8 + $0x20] sm:$0xff]
    %v126 = vld [vmem:[#allocation8 + $0x28] sm:$0xff]
    %v127 = vld [vmem:[#allocation8 + $0x30] sm:$0xff]
    %v128 = vld [vmem:[#allocation8 + $0x38] sm:$0xff]
    %v129 = vld [vmem:[#allocation8 + $0x40] sm:$0xff]
    %v130 = vld [vmem:[#allocation8 + $0x48] sm:$0xff]
    %v131 = vld [vmem:[#allocation8 + $0x50] sm:$0xff]
    %v132 = vld [vmem:[#allocation8 + $0x58] sm:$0xff]
    %v133 = vld [vmem:[#allocation8 + $0x60] sm:$0xff]
    %v134 = vld [vmem:[#allocation8 + $0x68] sm:$0xff]
    %v135 = vld [vmem:[#allocation8 + $0x70] sm:$0xff]
    %v136 = vld [vmem:[#allocation8 + $0x78] sm:$0xff]
    %v137 = vld [vmem:[#allocation8 + $0x80] sm:$0xff]
    %v138 = vld [vmem:[#allocation8 + $0x88] sm:$0xff]
    %v139 = vld [vmem:[#allocation8 + $0x90] sm:$0xff]
    %v140 = vld [vmem:[#allocation8 + $0x98] sm:$0xff]
    %v141 = vld [vmem:[#allocation8 + $0xa0] sm:$0xff]
    %v142 = vld [vmem:[#allocation8 + $0xa8] sm:$0xff]
    %v143 = vld [vmem:[#allocation8 + $0xb0] sm:$0xff]
    %v144 = vld [vmem:[#allocation8 + $0xb8] sm:$0xff]
    %v145 = vld [vmem:[#allocation8 + $0xc0] sm:$0xff]
    %v146 = vld [vmem:[#allocation8 + $0xc8] sm:$0xff]
    %v147 = vld [vmem:[#allocation8 + $0xd0] sm:$0xff]
    %v148 = vld [vmem:[#allocation8 + $0xd8] sm:$0xff]
    %v149 = vld [vmem:[#allocation8 + $0xe0] sm:$0xff]
    %v150 = vld [vmem:[#allocation8 + $0xe8] sm:$0xff]
    %v151 = vld [vmem:[#allocation8 + $0xf0] sm:$0xff]
    %v152 = vld [vmem:[#allocation8 + $0xf8] sm:$0xff]
    %v153 = vld [vmem:[#allocation3] sm:$0xff]
    %v154 = vld [vmem:[#allocation3 + $0x8] sm:$0xff]
    %v155 = vld [vmem:[#allocation3 + $0x10] sm:$0xff]
    %v156 = vld [vmem:[#allocation3 + $0x18] sm:$0xff]
    %v157 = vld [vmem:[#allocation3 + $0x20] sm:$0xff]
    %v158 = vld [vmem:[#allocation3 + $0x28] sm:$0xff]
    %v159 = vld [vmem:[#allocation3 + $0x30] sm:$0xff]
    %v160 = vld [vmem:[#allocation3 + $0x38] sm:$0xff]
    %v161 = vld [vmem:[#allocation3 + $0x40] sm:$0xff]
    %v162 = vld [vmem:[#allocation3 + $0x48] sm:$0xff]
    %v163 = vld [vmem:[#allocation3 + $0x50] sm:$0xff]
    %v164 = vld [vmem:[#allocation3 + $0x58] sm:$0xff]
    %v165 = vld [vmem:[#allocation3 + $0x60] sm:$0xff]
    %v166 = vld [vmem:[#allocation3 + $0x68] sm:$0xff]
    %v167 = vld [vmem:[#allocation3 + $0x70] sm:$0xff]
    %v168 = vld [vmem:[#allocation3 + $0x78] sm:$0xff]
    %v169 = vld [vmem:[#allocation3 + $0x80] sm:$0xff]
    %v170 = vld [vmem:[#allocation3 + $0x88] sm:$0xff]
    %v171 = vld [vmem:[#allocation3 + $0x90] sm:$0xff]
    %v172 = vld [vmem:[#allocation3 + $0x98] sm:$0xff]
    %v173 = vld [vmem:[#allocation3 + $0xa0] sm:$0xff]
    %v174 = vld [vmem:[#allocation3 + $0xa8] sm:$0xff]
    %v175 = vld [vmem:[#allocation3 + $0xb0] sm:$0xff]
    %v176 = vld [vmem:[#allocation3 + $0xb8] sm:$0xff]
    %v177 = vld [vmem:[#allocation3 + $0xc0] sm:$0xff]
    %v178 = vld [vmem:[#allocation3 + $0xc8] sm:$0xff]
    %v179 = vld [vmem:[#allocation3 + $0xd0] sm:$0xff]
    %v180 = vld [vmem:[#allocation3 + $0xd8] sm:$0xff]
    %v181 = vld [vmem:[#allocation3 + $0xe0] sm:$0xff]
    %v182 = vld [vmem:[#allocation3 + $0xe8] sm:$0xff]
    %v183 = vld [vmem:[#allocation3 + $0xf0] sm:$0xff]
    %v184 = vld [vmem:[#allocation3 + $0xf8] sm:$0xff]
    %v217 = vunpack.c.l.b16 %v153
    %v218 = vunpack.c.h.b16 %v153
    %v219 = vunpack.c.l.b16 %v154
    %v220 = vunpack.c.h.b16 %v154
    %v221 = vunpack.c.l.b16 %v155
    %v222 = vunpack.c.h.b16 %v155
    %v223 = vunpack.c.l.b16 %v156
    %v224 = vunpack.c.h.b16 %v156
    %v225 = vunpack.c.l.b16 %v157
    %v226 = vunpack.c.h.b16 %v157
    %v227 = vunpack.c.l.b16 %v158
    %v228 = vunpack.c.h.b16 %v158
    %v229 = vunpack.c.l.b16 %v159
    %v230 = vunpack.c.h.b16 %v159
    %v231 = vunpack.c.l.b16 %v160
    %v232 = vunpack.c.h.b16 %v160
    %v233 = vunpack.c.l.b16 %v161
    %v234 = vunpack.c.h.b16 %v161
    %v235 = vunpack.c.l.b16 %v162
    %v236 = vunpack.c.h.b16 %v162
    %v237 = vunpack.c.l.b16 %v163
    %v238 = vunpack.c.h.b16 %v163
    %v239 = vunpack.c.l.b16 %v164
    %v240 = vunpack.c.h.b16 %v164
    %v241 = vunpack.c.l.b16 %v165
    %v242 = vunpack.c.h.b16 %v165
    %v243 = vunpack.c.l.b16 %v166
    %v244 = vunpack.c.h.b16 %v166
    %v245 = vunpack.c.l.b16 %v167
    %v246 = vunpack.c.h.b16 %v167
    %v247 = vunpack.c.l.b16 %v168
    %v248 = vunpack.c.h.b16 %v168
    %v249 = vunpack.c.l.b16 %v169
    %v250 = vunpack.c.h.b16 %v169
    %v251 = vunpack.c.l.b16 %v170
    %v252 = vunpack.c.h.b16 %v170
    %v253 = vunpack.c.l.b16 %v171
    %v254 = vunpack.c.h.b16 %v171
    %v255 = vunpack.c.l.b16 %v172
    %v256 = vunpack.c.h.b16 %v172
    %v257 = vunpack.c.l.b16 %v173
    %v258 = vunpack.c.h.b16 %v173
    %v259 = vunpack.c.l.b16 %v174
    %v260 = vunpack.c.h.b16 %v174
    %v261 = vunpack.c.l.b16 %v175
    %v262 = vunpack.c.h.b16 %v175
    %v263 = vunpack.c.l.b16 %v176
    %v264 = vunpack.c.h.b16 %v176
    %v265 = vunpack.c.l.b16 %v177
    %v266 = vunpack.c.h.b16 %v177
    %v267 = vunpack.c.l.b16 %v178
    %v268 = vunpack.c.h.b16 %v178
    %v269 = vunpack.c.l.b16 %v179
    %v270 = vunpack.c.h.b16 %v179
    %v271 = vunpack.c.l.b16 %v180
    %v272 = vunpack.c.h.b16 %v180
    %v273 = vunpack.c.l.b16 %v181
    %v274 = vunpack.c.h.b16 %v181
    %v275 = vunpack.c.l.b16 %v182
    %v276 = vunpack.c.h.b16 %v182
    %v277 = vunpack.c.l.b16 %v183
    %v278 = vunpack.c.h.b16 %v183
    %v279 = vunpack.c.l.b16 %v184
    %v280 = vunpack.c.h.b16 %v184
    %v281 = vpack.c.b16 %v219, %v217
    %v282 = vpack.c.b16 %v220, %v218
    %v283 = vpack.c.b16 %v223, %v221
    %v284 = vpack.c.b16 %v224, %v222
    %v285 = vpack.c.b16 %v227, %v225
    %v286 = vpack.c.b16 %v228, %v226
    %v287 = vpack.c.b16 %v231, %v229
    %v288 = vpack.c.b16 %v232, %v230
    %v289 = vpack.c.b16 %v235, %v233
    %v290 = vpack.c.b16 %v236, %v234
    %v291 = vpack.c.b16 %v239, %v237
    %v292 = vpack.c.b16 %v240, %v238
    %v293 = vpack.c.b16 %v243, %v241
    %v294 = vpack.c.b16 %v244, %v242
    %v295 = vpack.c.b16 %v247, %v245
    %v296 = vpack.c.b16 %v248, %v246
    %v297 = vpack.c.b16 %v251, %v249
    %v298 = vpack.c.b16 %v252, %v250
    %v299 = vpack.c.b16 %v255, %v253
    %v300 = vpack.c.b16 %v256, %v254
    %v301 = vpack.c.b16 %v259, %v257
    %v302 = vpack.c.b16 %v260, %v258
    %v303 = vpack.c.b16 %v263, %v261
    %v304 = vpack.c.b16 %v264, %v262
    %v305 = vpack.c.b16 %v267, %v265
    %v306 = vpack.c.b16 %v268, %v266
    %v307 = vpack.c.b16 %v271, %v269
    %v308 = vpack.c.b16 %v272, %v270
    %v309 = vpack.c.b16 %v275, %v273
    %v310 = vpack.c.b16 %v276, %v274
    %v311 = vpack.c.b16 %v279, %v277
    %v312 = vpack.c.b16 %v280, %v278
    %v377 = vunpack.c.l.b16 %v89
    %v378 = vunpack.c.l.b16 %v90
    %v379 = vunpack.c.l.b16 %v91
    %v380 = vunpack.c.l.b16 %v92
    %v381 = vunpack.c.l.b16 %v93
    %v382 = vunpack.c.l.b16 %v94
    %v383 = vunpack.c.l.b16 %v95
    %v384 = vunpack.c.l.b16 %v96
    %v385 = vunpack.c.l.b16 %v97
    %v386 = vunpack.c.l.b16 %v98
    %v387 = vunpack.c.l.b16 %v99
    %v388 = vunpack.c.l.b16 %v100
    %v389 = vunpack.c.l.b16 %v101
    %v390 = vunpack.c.l.b16 %v102
    %v391 = vunpack.c.l.b16 %v103
    %v392 = vunpack.c.l.b16 %v104
    %v393 = vunpack.c.l.b16 %v105
    %v394 = vunpack.c.l.b16 %v106
    %v395 = vunpack.c.l.b16 %v107
    %v396 = vunpack.c.l.b16 %v108
    %v397 = vunpack.c.l.b16 %v109
    %v398 = vunpack.c.l.b16 %v110
    %v399 = vunpack.c.l.b16 %v111
    %v400 = vunpack.c.l.b16 %v112
    %v401 = vunpack.c.l.b16 %v113
    %v402 = vunpack.c.l.b16 %v114
    %v403 = vunpack.c.l.b16 %v115
    %v404 = vunpack.c.l.b16 %v116
    %v405 = vunpack.c.l.b16 %v117
    %v406 = vunpack.c.l.b16 %v118
    %v407 = vunpack.c.l.b16 %v119
    %v408 = vunpack.c.l.b16 %v120
    %v409 = vpack.c.b16 %v378, %v377
    %v410 = vpack.c.b16 %v380, %v379
    %v411 = vpack.c.b16 %v382, %v381
    %v412 = vpack.c.b16 %v384, %v383
    %v413 = vpack.c.b16 %v386, %v385
    %v414 = vpack.c.b16 %v388, %v387
    %v415 = vpack.c.b16 %v390, %v389
    %v416 = vpack.c.b16 %v392, %v391
    %v417 = vpack.c.b16 %v394, %v393
    %v418 = vpack.c.b16 %v396, %v395
    %v419 = vpack.c.b16 %v398, %v397
    %v420 = vpack.c.b16 %v400, %v399
    %v421 = vpack.c.b16 %v402, %v401
    %v422 = vpack.c.b16 %v404, %v403
    %v423 = vpack.c.b16 %v406, %v405
    %v424 = vpack.c.b16 %v408, %v407
    %441 = vmatpush.bf16.msra.mxu0 %v416
    %442 = vmatpush.bf16.msra.mxu0 %v415
    %443 = vmatpush.bf16.msra.mxu0 %v414
    %444 = vmatpush.bf16.msra.mxu0 %v413
    %445 = vmatpush.bf16.msra.mxu0 %v412
    %446 = vmatpush.bf16.msra.mxu0 %v411
    %447 = vmatpush.bf16.msra.mxu0 %v410
    %448 = vmatpush.bf16.msra.mxu0 %v409
    %449 = vmatmul.bf16.gmra.mxu0 %v281
    %v450 = vpop.f32.mrf.mxu0
    %v451 = vadd.f32 0.0, %v450
    %v452 = vpop.f32.mrf.mxu0
    %v453 = vadd.f32 0.0, %v452
    %454 = vmatmul.bf16.gmra.mxu0 %v283
    %v455 = vpop.f32.mrf.mxu0
    %v456 = vadd.f32 0.0, %v455
    %v457 = vpop.f32.mrf.mxu0
    %v458 = vadd.f32 0.0, %v457
    %459 = vmatmul.bf16.gmra.mxu0 %v285
    %v460 = vpop.f32.mrf.mxu0
    %v461 = vadd.f32 0.0, %v460
    %v462 = vpop.f32.mrf.mxu0
    %v463 = vadd.f32 0.0, %v462
    %464 = vmatmul.bf16.gmra.mxu0 %v287
    %v465 = vpop.f32.mrf.mxu0
    %v466 = vadd.f32 0.0, %v465
    %v467 = vpop.f32.mrf.mxu0
    %v468 = vadd.f32 0.0, %v467
    %469 = vmatmul.bf16.gmra.mxu0 %v289
    %v470 = vpop.f32.mrf.mxu0
    %v471 = vadd.f32 0.0, %v470
    %v472 = vpop.f32.mrf.mxu0
    %v473 = vadd.f32 0.0, %v472
    %474 = vmatmul.bf16.gmra.mxu0 %v291
    %v475 = vpop.f32.mrf.mxu0
    %v476 = vadd.f32 0.0, %v475
    %v477 = vpop.f32.mrf.mxu0
    %v478 = vadd.f32 0.0, %v477
    %479 = vmatmul.bf16.gmra.mxu0 %v293
    %v480 = vpop.f32.mrf.mxu0
    %v481 = vadd.f32 0.0, %v480
    %v482 = vpop.f32.mrf.mxu0
    %v483 = vadd.f32 0.0, %v482
    %484 = vmatmul.bf16.gmra.mxu0 %v295
    %v485 = vpop.f32.mrf.mxu0
    %v486 = vadd.f32 0.0, %v485
    %v487 = vpop.f32.mrf.mxu0
    %v488 = vadd.f32 0.0, %v487
    %489 = vmatmul.bf16.gmra.mxu0 %v297
    %v490 = vpop.f32.mrf.mxu0
    %v491 = vadd.f32 0.0, %v490
    %v492 = vpop.f32.mrf.mxu0
    %v493 = vadd.f32 0.0, %v492
    %494 = vmatmul.bf16.gmra.mxu0 %v299
    %v495 = vpop.f32.mrf.mxu0
    %v496 = vadd.f32 0.0, %v495
    %v497 = vpop.f32.mrf.mxu0
    %v498 = vadd.f32 0.0, %v497
    %499 = vmatmul.bf16.gmra.mxu0 %v301
    %v500 = vpop.f32.mrf.mxu0
    %v501 = vadd.f32 0.0, %v500
    %v502 = vpop.f32.mrf.mxu0
    %v503 = vadd.f32 0.0, %v502
    %504 = vmatmul.bf16.gmra.mxu0 %v303
    %v505 = vpop.f32.mrf.mxu0
    %v506 = vadd.f32 0.0, %v505
    %v507 = vpop.f32.mrf.mxu0
    %v508 = vadd.f32 0.0, %v507
    %509 = vmatmul.bf16.gmra.mxu0 %v305
    %v510 = vpop.f32.mrf.mxu0
    %v511 = vadd.f32 0.0, %v510
    %v512 = vpop.f32.mrf.mxu0
    %v513 = vadd.f32 0.0, %v512
    %514 = vmatmul.bf16.gmra.mxu0 %v307
    %v515 = vpop.f32.mrf.mxu0
    %v516 = vadd.f32 0.0, %v515
    %v517 = vpop.f32.mrf.mxu0
    %v518 = vadd.f32 0.0, %v517
    %519 = vmatmul.bf16.gmra.mxu0 %v309
    %v520 = vpop.f32.mrf.mxu0
    %v521 = vadd.f32 0.0, %v520
    %v522 = vpop.f32.mrf.mxu0
    %v523 = vadd.f32 0.0, %v522
    %524 = vmatmul.bf16.gmra.mxu0 %v311
    %v525 = vpop.f32.mrf.mxu0
    %v526 = vadd.f32 0.0, %v525
    %v527 = vpop.f32.mrf.mxu0
    %v528 = vadd.f32 0.0, %v527
    %529 = vdwg.mxu0
    %530 = vmatpush.bf16.msra.mxu0 %v424
    %531 = vmatpush.bf16.msra.mxu0 %v423
    %532 = vmatpush.bf16.msra.mxu0 %v422
    %533 = vmatpush.bf16.msra.mxu0 %v421
    %534 = vmatpush.bf16.msra.mxu0 %v420
    %535 = vmatpush.bf16.msra.mxu0 %v419
    %536 = vmatpush.bf16.msra.mxu0 %v418
    %537 = vmatpush.bf16.msra.mxu0 %v417
    %538 = vmatmul.bf16.gmra.mxu0 %v282
    %v539 = vpop.f32.mrf.mxu0
    %v540 = vadd.f32 %v451, %v539
    %v541 = vpop.f32.mrf.mxu0
    %v542 = vadd.f32 %v453, %v541
    %543 = vmatmul.bf16.gmra.mxu0 %v284
    %v544 = vpop.f32.mrf.mxu0
    %v545 = vadd.f32 %v456, %v544
    %v546 = vpop.f32.mrf.mxu0
    %v547 = vadd.f32 %v458, %v546
    %548 = vmatmul.bf16.gmra.mxu0 %v286
    %v549 = vpop.f32.mrf.mxu0
    %v550 = vadd.f32 %v461, %v549
    %v551 = vpop.f32.mrf.mxu0
    %v552 = vadd.f32 %v463, %v551
    %553 = vmatmul.bf16.gmra.mxu0 %v288
    %v554 = vpop.f32.mrf.mxu0
    %v555 = vadd.f32 %v466, %v554
    %v556 = vpop.f32.mrf.mxu0
    %v557 = vadd.f32 %v468, %v556
    %558 = vmatmul.bf16.gmra.mxu0 %v290
    %v559 = vpop.f32.mrf.mxu0
    %v560 = vadd.f32 %v471, %v559
    %v561 = vpop.f32.mrf.mxu0
    %v562 = vadd.f32 %v473, %v561
    %563 = vmatmul.bf16.gmra.mxu0 %v292
    %v564 = vpop.f32.mrf.mxu0
    %v565 = vadd.f32 %v476, %v564
    %v566 = vpop.f32.mrf.mxu0
    %v567 = vadd.f32 %v478, %v566
    %568 = vmatmul.bf16.gmra.mxu0 %v294
    %v569 = vpop.f32.mrf.mxu0
    %v570 = vadd.f32 %v481, %v569
    %v571 = vpop.f32.mrf.mxu0
    %v572 = vadd.f32 %v483, %v571
    %573 = vmatmul.bf16.gmra.mxu0 %v296
    %v574 = vpop.f32.mrf.mxu0
    %v575 = vadd.f32 %v486, %v574
    %v576 = vpop.f32.mrf.mxu0
    %v577 = vadd.f32 %v488, %v576
    %578 = vmatmul.bf16.gmra.mxu0 %v298
    %v579 = vpop.f32.mrf.mxu0
    %v580 = vadd.f32 %v491, %v579
    %v581 = vpop.f32.mrf.mxu0
    %v582 = vadd.f32 %v493, %v581
    %583 = vmatmul.bf16.gmra.mxu0 %v300
    %v584 = vpop.f32.mrf.mxu0
    %v585 = vadd.f32 %v496, %v584
    %v586 = vpop.f32.mrf.mxu0
    %v587 = vadd.f32 %v498, %v586
    %588 = vmatmul.bf16.gmra.mxu0 %v302
    %v589 = vpop.f32.mrf.mxu0
    %v590 = vadd.f32 %v501, %v589
    %v591 = vpop.f32.mrf.mxu0
    %v592 = vadd.f32 %v503, %v591
    %593 = vmatmul.bf16.gmra.mxu0 %v304
    %v594 = vpop.f32.mrf.mxu0
    %v595 = vadd.f32 %v506, %v594
    %v596 = vpop.f32.mrf.mxu0
    %v597 = vadd.f32 %v508, %v596
    %598 = vmatmul.bf16.gmra.mxu0 %v306
    %v599 = vpop.f32.mrf.mxu0
    %v600 = vadd.f32 %v511, %v599
    %v601 = vpop.f32.mrf.mxu0
    %v602 = vadd.f32 %v513, %v601
    %603 = vmatmul.bf16.gmra.mxu0 %v308
    %v604 = vpop.f32.mrf.mxu0
    %v605 = vadd.f32 %v516, %v604
    %v606 = vpop.f32.mrf.mxu0
    %v607 = vadd.f32 %v518, %v606
    %608 = vmatmul.bf16.gmra.mxu0 %v310
    %v609 = vpop.f32.mrf.mxu0
    %v610 = vadd.f32 %v521, %v609
    %v611 = vpop.f32.mrf.mxu0
    %v612 = vadd.f32 %v523, %v611
    %613 = vmatmul.bf16.gmra.mxu0 %v312
    %v614 = vpop.f32.mrf.mxu0
    %v615 = vadd.f32 %v526, %v614
    %v616 = vpop.f32.mrf.mxu0
    %v617 = vadd.f32 %v528, %v616
    %618 = vdwg.mxu0
    %v619 = vadd.f32 %v121, %v540
    %v620 = vadd.f32 %v122, %v542
    %v621 = vadd.f32 %v123, %v545
    %v622 = vadd.f32 %v124, %v547
    %v623 = vadd.f32 %v125, %v550
    %v624 = vadd.f32 %v126, %v552
    %v625 = vadd.f32 %v127, %v555
    %v626 = vadd.f32 %v128, %v557
    %v627 = vadd.f32 %v129, %v560
    %v628 = vadd.f32 %v130, %v562
    %v629 = vadd.f32 %v131, %v565
    %v630 = vadd.f32 %v132, %v567
    %v631 = vadd.f32 %v133, %v570
    %v632 = vadd.f32 %v134, %v572
    %v633 = vadd.f32 %v135, %v575
    %v634 = vadd.f32 %v136, %v577
    %v635 = vadd.f32 %v137, %v580
    %v636 = vadd.f32 %v138, %v582
    %v637 = vadd.f32 %v139, %v585
    %v638 = vadd.f32 %v140, %v587
    %v639 = vadd.f32 %v141, %v590
    %v640 = vadd.f32 %v142, %v592
    %v641 = vadd.f32 %v143, %v595
    %v642 = vadd.f32 %v144, %v597
    %v643 = vadd.f32 %v145, %v600
    %v644 = vadd.f32 %v146, %v602
    %v645 = vadd.f32 %v147, %v605
    %v646 = vadd.f32 %v148, %v607
    %v647 = vadd.f32 %v149, %v610
    %v648 = vadd.f32 %v150, %v612
    %v649 = vadd.f32 %v151, %v615
    %v650 = vadd.f32 %v152, %v617
    %651 = vst [vmem:[#allocation8] sm:$0xff] %v619
    %652 = vst [vmem:[#allocation8 + $0x8] sm:$0xff] %v620
    %653 = vst [vmem:[#allocation8 + $0x10] sm:$0xff] %v621
    %654 = vst [vmem:[#allocation8 + $0x18] sm:$0xff] %v622
    %655 = vst [vmem:[#allocation8 + $0x20] sm:$0xff] %v623
    %656 = vst [vmem:[#allocation8 + $0x28] sm:$0xff] %v624
    %657 = vst [vmem:[#allocation8 + $0x30] sm:$0xff] %v625
    %658 = vst [vmem:[#allocation8 + $0x38] sm:$0xff] %v626
    %659 = vst [vmem:[#allocation8 + $0x40] sm:$0xff] %v627
    %660 = vst [vmem:[#allocation8 + $0x48] sm:$0xff] %v628
    %661 = vst [vmem:[#allocation8 + $0x50] sm:$0xff] %v629
    %662 = vst [vmem:[#allocation8 + $0x58] sm:$0xff] %v630
    %663 = vst [vmem:[#allocation8 + $0x60] sm:$0xff] %v631
    %664 = vst [vmem:[#allocation8 + $0x68] sm:$0xff] %v632
    %665 = vst [vmem:[#allocation8 + $0x70] sm:$0xff] %v633
    %666 = vst [vmem:[#allocation8 + $0x78] sm:$0xff] %v634
    %667 = vst [vmem:[#allocation8 + $0x80] sm:$0xff] %v635
    %668 = vst [vmem:[#allocation8 + $0x88] sm:$0xff] %v636
    %669 = vst [vmem:[#allocation8 + $0x90] sm:$0xff] %v637
    %670 = vst [vmem:[#allocation8 + $0x98] sm:$0xff] %v638
    %671 = vst [vmem:[#allocation8 + $0xa0] sm:$0xff] %v639
    %672 = vst [vmem:[#allocation8 + $0xa8] sm:$0xff] %v640
    %673 = vst [vmem:[#allocation8 + $0xb0] sm:$0xff] %v641
    %674 = vst [vmem:[#allocation8 + $0xb8] sm:$0xff] %v642
    %675 = vst [vmem:[#allocation8 + $0xc0] sm:$0xff] %v643
    %676 = vst [vmem:[#allocation8 + $0xc8] sm:$0xff] %v644
    %677 = vst [vmem:[#allocation8 + $0xd0] sm:$0xff] %v645
    %678 = vst [vmem:[#allocation8 + $0xd8] sm:$0xff] %v646
    %679 = vst [vmem:[#allocation8 + $0xe0] sm:$0xff] %v647
    %680 = vst [vmem:[#allocation8 + $0xe8] sm:$0xff] %v648
    %681 = vst [vmem:[#allocation8 + $0xf0] sm:$0xff] %v649
    %682 = vst [vmem:[#allocation8 + $0xf8] sm:$0xff] %v650
    // Predicated region
    $region26: #{tpu_custom_call.1} parent=1 // pred_check
      %p683 = pneg %p48
    $region27: #{tpu_custom_call.1} parent=1 // pred_check_branch
      %685 = sbr.rel (%p683) target = $region29
    $region28: #{tpu_custom_call.1} parent=1 // pred_region
      %v686 = vld [vmem:[#allocation8] sm:$0xff]
      %v687 = vld [vmem:[#allocation8 + $0x8] sm:$0xff]
      %v688 = vld [vmem:[#allocation8 + $0x10] sm:$0xff]
      %v689 = vld [vmem:[#allocation8 + $0x18] sm:$0xff]
      %v690 = vld [vmem:[#allocation8 + $0x20] sm:$0xff]
      %v691 = vld [vmem:[#allocation8 + $0x28] sm:$0xff]
      %v692 = vld [vmem:[#allocation8 + $0x30] sm:$0xff]
      %v693 = vld [vmem:[#allocation8 + $0x38] sm:$0xff]
      %v694 = vld [vmem:[#allocation8 + $0x40] sm:$0xff]
      %v695 = vld [vmem:[#allocation8 + $0x48] sm:$0xff]
      %v696 = vld [vmem:[#allocation8 + $0x50] sm:$0xff]
      %v697 = vld [vmem:[#allocation8 + $0x58] sm:$0xff]
      %v698 = vld [vmem:[#allocation8 + $0x60] sm:$0xff]
      %v699 = vld [vmem:[#allocation8 + $0x68] sm:$0xff]
      %v700 = vld [vmem:[#allocation8 + $0x70] sm:$0xff]
      %v701 = vld [vmem:[#allocation8 + $0x78] sm:$0xff]
      %v702 = vld [vmem:[#allocation8 + $0x80] sm:$0xff]
      %v703 = vld [vmem:[#allocation8 + $0x88] sm:$0xff]
      %v704 = vld [vmem:[#allocation8 + $0x90] sm:$0xff]
      %v705 = vld [vmem:[#allocation8 + $0x98] sm:$0xff]
      %v706 = vld [vmem:[#allocation8 + $0xa0] sm:$0xff]
      %v707 = vld [vmem:[#allocation8 + $0xa8] sm:$0xff]
      %v708 = vld [vmem:[#allocation8 + $0xb0] sm:$0xff]
      %v709 = vld [vmem:[#allocation8 + $0xb8] sm:$0xff]
      %v710 = vld [vmem:[#allocation8 + $0xc0] sm:$0xff]
      %v711 = vld [vmem:[#allocation8 + $0xc8] sm:$0xff]
      %v712 = vld [vmem:[#allocation8 + $0xd0] sm:$0xff]
      %v713 = vld [vmem:[#allocation8 + $0xd8] sm:$0xff]
      %v714 = vld [vmem:[#allocation8 + $0xe0] sm:$0xff]
      %v715 = vld [vmem:[#allocation8 + $0xe8] sm:$0xff]
      %v716 = vld [vmem:[#allocation8 + $0xf0] sm:$0xff]
      %v717 = vld [vmem:[#allocation8 + $0xf8] sm:$0xff]
      %s718 = sld [smem:[#allocation2]]
      %v719 = vstv %s718
      %v720 = vadd.f32 %v686, %v719
      %v721 = vadd.f32 %v687, %v719
      %v722 = vadd.f32 %v688, %v719
      %v723 = vadd.f32 %v689, %v719
      %v724 = vadd.f32 %v690, %v719
      %v725 = vadd.f32 %v691, %v719
      %v726 = vadd.f32 %v692, %v719
      %v727 = vadd.f32 %v693, %v719
      %v728 = vadd.f32 %v694, %v719
      %v729 = vadd.f32 %v695, %v719
      %v730 = vadd.f32 %v696, %v719
      %v731 = vadd.f32 %v697, %v719
      %v732 = vadd.f32 %v698, %v719
      %v733 = vadd.f32 %v699, %v719
      %v734 = vadd.f32 %v700, %v719
      %v735 = vadd.f32 %v701, %v719
      %v736 = vadd.f32 %v702, %v719
      %v737 = vadd.f32 %v703, %v719
      %v738 = vadd.f32 %v704, %v719
      %v739 = vadd.f32 %v705, %v719
      %v740 = vadd.f32 %v706, %v719
      %v741 = vadd.f32 %v707, %v719
      %v742 = vadd.f32 %v708, %v719
      %v743 = vadd.f32 %v709, %v719
      %v744 = vadd.f32 %v710, %v719
      %v745 = vadd.f32 %v711, %v719
      %v746 = vadd.f32 %v712, %v719
      %v747 = vadd.f32 %v713, %v719
      %v748 = vadd.f32 %v714, %v719
      %v749 = vadd.f32 %v715, %v719
      %v750 = vadd.f32 %v716, %v719
      %v751 = vadd.f32 %v717, %v719
      %752 = vst [vmem:[#allocation8] sm:$0xff] %v720
      %753 = vst [vmem:[#allocation8 + $0x8] sm:$0xff] %v721
      %754 = vst [vmem:[#allocation8 + $0x10] sm:$0xff] %v722
      %755 = vst [vmem:[#allocation8 + $0x18] sm:$0xff] %v723
      %756 = vst [vmem:[#allocation8 + $0x20] sm:$0xff] %v724
      %757 = vst [vmem:[#allocation8 + $0x28] sm:$0xff] %v725
      %758 = vst [vmem:[#allocation8 + $0x30] sm:$0xff] %v726
      %759 = vst [vmem:[#allocation8 + $0x38] sm:$0xff] %v727
      %760 = vst [vmem:[#allocation8 + $0x40] sm:$0xff] %v728
      %761 = vst [vmem:[#allocation8 + $0x48] sm:$0xff] %v729
      %762 = vst [vmem:[#allocation8 + $0x50] sm:$0xff] %v730
      %763 = vst [vmem:[#allocation8 + $0x58] sm:$0xff] %v731
      %764 = vst [vmem:[#allocation8 + $0x60] sm:$0xff] %v732
      %765 = vst [vmem:[#allocation8 + $0x68] sm:$0xff] %v733
      %766 = vst [vmem:[#allocation8 + $0x70] sm:$0xff] %v734
      %767 = vst [vmem:[#allocation8 + $0x78] sm:$0xff] %v735
      %768 = vst [vmem:[#allocation8 + $0x80] sm:$0xff] %v736
      %769 = vst [vmem:[#allocation8 + $0x88] sm:$0xff] %v737
      %770 = vst [vmem:[#allocation8 + $0x90] sm:$0xff] %v738
      %771 = vst [vmem:[#allocation8 + $0x98] sm:$0xff] %v739
      %772 = vst [vmem:[#allocation8 + $0xa0] sm:$0xff] %v740
      %773 = vst [vmem:[#allocation8 + $0xa8] sm:$0xff] %v741
      %774 = vst [vmem:[#allocation8 + $0xb0] sm:$0xff] %v742
      %775 = vst [vmem:[#allocation8 + $0xb8] sm:$0xff] %v743
      %776 = vst [vmem:[#allocation8 + $0xc0] sm:$0xff] %v744
      %777 = vst [vmem:[#allocation8 + $0xc8] sm:$0xff] %v745
      %778 = vst [vmem:[#allocation8 + $0xd0] sm:$0xff] %v746
      %779 = vst [vmem:[#allocation8 + $0xd8] sm:$0xff] %v747
      %780 = vst [vmem:[#allocation8 + $0xe0] sm:$0xff] %v748
      %781 = vst [vmem:[#allocation8 + $0xe8] sm:$0xff] %v749
      %782 = vst [vmem:[#allocation8 + $0xf0] sm:$0xff] %v750
      %783 = vst [vmem:[#allocation8 + $0xf8] sm:$0xff] %v751
    $region29: #{tpu_custom_call.1} parent=1 // pred_fallthru
      _
    // Predicated region
    $region30: #{tpu_custom_call.1} parent=1 // pred_check
      _
    $region31: #{tpu_custom_call.1} parent=1 // pred_check_branch
      %785 = sbr.rel (0) target = $region33
    $region32: #{tpu_custom_call.1} parent=1 // pred_region
      %787 = vsyncadd [#allocation5], 0
      %s788 = sshll.u32 [#allocation8], 4
      %s789 = int_to_ptr.vmem [resolvable:$true] %s788
      %s790 = sshll.u32 %s3, 4
      %s791 = int_to_ptr.hbm [resolvable:$true] %s790
      %796 = dma.vmem_to_hbm [thread:$0]  %s789, 4096, %s791, [#allocation5], 128, 128, 8
    $region33: #{tpu_custom_call.1} parent=1 // pred_fallthru
      _
    // Predicated region
    $region34: #{tpu_custom_call.1} parent=1 // pred_check
      _
    $region35: #{tpu_custom_call.1} parent=1 // pred_check_branch
      %798 = sbr.rel (0) target = $region37
    $region36: #{tpu_custom_call.1} parent=1 // pred_region
      %800 = dma.done [#allocation5], 4096
    $region37: #{tpu_custom_call.1} parent=1 // pred_fallthru
      _
    %801 = vsyncpa [#allocation4], 1
    %802 = vsyncpa [#allocation7], 1
    %803 = vsyncpa [#allocation5], 1

</llo_original>
